<compile_context>
chip_gen: v7x
topology: tpu7x:2x2x1
jax: 0.10.0
libtpu: 0.0.40
codegen_flags: <defaults>
</compile_context>

<pallas_src>
import math

import jax
import jax.numpy as jnp
from jax.experimental import pallas as pl
from jax.experimental.pallas import tpu as pltpu

LANE = 128          # lane width: hidden feature dim padded to a multiple of this
MAX_TILE_B = 256    # batch tile (raiseable to 512 on v6e for very large B)
DOT_DTYPE = jnp.bfloat16


def _round_up(n: int, m: int) -> int:
    return ((n + m - 1) // m) * m


def _resident_spec(block_shape, index_map):
    """BlockSpec for operands whose block never changes across the grid.

    pipeline_mode=pl.Buffered(buffer_count=1) disables the (useless) second
    pipeline buffer for revisited blocks, halving resident weight VMEM.
    Falls back gracefully on JAX versions without the kwarg.
    """
    if hasattr(pl, "Buffered"):
        try:
            return pl.BlockSpec(block_shape, index_map,
                                pipeline_mode=pl.Buffered(buffer_count=1))
        except TypeError:
            pass
    return pl.BlockSpec(block_shape, index_map)


# ----------------------------------------------------------------------------
# Parameter construction (synthetic, PyTorch layouts) and packing/folding
# ----------------------------------------------------------------------------
def init_params(key, num_inputs, num_hidden, num_deep, eps=1e-5):
    """Deterministic synthetic parameters matching the module's shapes."""
    dims = [(num_inputs, num_hidden)] + [(num_hidden, num_hidden)] * num_deep
    raw = []
    for din, dout in dims:
        key, k_w, k_b, k_g, k_be, k_m, k_v = jax.random.split(key, 7)
        bound = 1.0 / math.sqrt(din)
        w = jax.random.uniform(k_w, (dout, din), jnp.float32, -bound, bound)
        b = jax.random.uniform(k_b, (dout,), jnp.float32, -bound, bound)
        gamma = 1.0 + 0.1 * jax.random.normal(k_g, (dout,), jnp.float32)
        beta = 0.1 * jax.random.normal(k_be, (dout,), jnp.float32)
        run_mean = 0.1 * jax.random.normal(k_m, (dout,), jnp.float32)
        run_var = jnp.abs(1.0 + 0.1 * jax.random.normal(k_v, (dout,), jnp.float32))
        # Eval-mode BN folded to per-feature scale/shift.
        inv_std = 1.0 / jnp.sqrt(run_var + eps)
        scale = gamma * inv_std
        shift = beta - run_mean * scale
        raw.append(dict(w=w, b=b, scale=scale, shift=shift))
    return raw


def pack_params(raw, num_inputs, num_hidden):
    """Fold BN into the following Linear; pad hidden dims to lane-dense 128; bf16 weights."""
    L = len(raw) - 1                       # number of deep layers
    dh_pad = _round_up(num_hidden, LANE)

    # --- BN folding: layer i's (scale, shift) commute into layer i+1's Linear ---
    w_eff = [raw[0]["w"].T]                # [Din, Dh]
    b_eff = [raw[0]["b"]]
    for i in range(1, L + 1):
        ps, pf = raw[i - 1]["scale"], raw[i - 1]["shift"]
        wt = raw[i]["w"].T                 # [Dh, Dh]
        w_eff.append(ps[:, None] * wt)
        b_eff.append(raw[i]["b"] + pf @ wt)
    scale_last, shift_last = raw[-1]["scale"], raw[-1]["shift"]

    def pad2(a, r, c):
        return jnp.zeros((r, c), jnp.float32).at[: a.shape[0], : a.shape[1]].set(a)

    def pad1(a, c):
        return jnp.zeros((c,), jnp.float32).at[: a.shape[0]].set(a)

    # Input feature dim stays UNPADDED (full-dim block is legal); only the
    # hidden dim is padded so every deep matmul / store is lane-dense.
    w0 = pad2(w_eff[0], num_inputs, dh_pad).astype(DOT_DTYPE)               # [Din, Dh_pad]
    wd = (jnp.stack([pad2(w, dh_pad, dh_pad) for w in w_eff[1:]]).astype(DOT_DTYPE)
          if L > 0 else None)                                               # [L, Dh_pad, Dh_pad]
    b = jnp.stack([pad1(bb, dh_pad) for bb in b_eff])                       # [L+1, Dh_pad] f32
    affine = jnp.stack([pad1(scale_last, dh_pad), pad1(shift_last, dh_pad)])  # [2, Dh_pad] f32
    return dict(w0=w0, wd=wd, b=b, affine=affine,
                num_inputs=num_inputs, num_hidden=num_hidden)


# ----------------------------------------------------------------------------
# Fused Pallas kernel: whole encoder stack in one pallas_call
# ----------------------------------------------------------------------------
def fcnn_encoder_forward(x, params, out_dtype=jnp.float32):
    w0, wd, b, affine = params["w0"], params["wd"], params["b"], params["affine"]
    num_hidden = params["num_hidden"]
    num_deep = 0 if wd is None else wd.shape[0]

    B, din = x.shape
    din_w, dh_pad = w0.shape
    assert din == din_w, "input feature dim mismatch"

    # Batch tile: 8-aligned sublanes, capped, and small enough that B spans
    # >=2 grid steps whenever possible (so a 2-TC chip can split the batch).
    tile_b = min(MAX_TILE_B, max(8, _round_up(pl.cdiv(B, 2), 8)))
    grid_b = pl.cdiv(B, tile_b)   # ragged last tile handled by Pallas; no batch padding

    def kernel(*refs):
        if num_deep > 0:
            x_ref, w0_ref, wd_ref, bias_ref, aff_ref, o_ref = refs
        else:
            x_ref, w0_ref, bias_ref, aff_ref, o_ref = refs
            wd_ref = None
        # In-kernel bf16 cast of the raw f32 input tile (no wrapper pad/cast).
        z = jnp.dot(x_ref[...].astype(DOT_DTYPE), w0_ref[...],
                    preferred_element_type=jnp.float32)
        z = jnp.maximum(z + bias_ref[0:1, :], 0.0)
        # Deep layers: activations stay on-chip.  Unrolled Python loop so the
        # LLO scheduler can co-issue each layer's bias/relu/cast VALU work
        # with the MXU pushes (the main non-memory lever on v5e).
        for l in range(num_deep):
            z = jnp.dot(z.astype(DOT_DTYPE), wd_ref[l],
                        preferred_element_type=jnp.float32)
            z = jnp.maximum(z + bias_ref[l + 1:l + 2, :], 0.0)
        # Last layer's BN as f32 epilogue; store only the real feature
        # columns, so there is no padded writeback nor a wrapper-side slice.
        y = z * aff_ref[0:1, :] + aff_ref[1:2, :]
        o_ref[...] = y[:, :num_hidden].astype(o_ref.dtype)

    in_specs = [
        pl.BlockSpec((tile_b, din), lambda i: (i, 0)),            # x: tiled over batch, f32
        _resident_spec((din, dh_pad), lambda i: (0, 0)),          # W0: VMEM-resident, 1 buffer
    ]
    args = [x, w0]
    if num_deep > 0:
        in_specs.append(_resident_spec((num_deep, dh_pad, dh_pad),
                                       lambda i: (0, 0, 0)))      # deep W stack
        args.append(wd)
    in_specs += [
        _resident_spec((num_deep + 1, dh_pad), lambda i: (0, 0)),  # stacked biases
        _resident_spec((2, dh_pad), lambda i: (0, 0)),             # [scale_last; shift_last]
    ]
    args += [b, affine]

    # Explicit scoped-VMEM budget: weights (conservatively 2 buffers in case
    # single-buffering is unavailable) + double-buffered activation tiles +
    # compute scratch, with headroom, clamped to the smallest physical VMEM
    # across targets (v7x: 64 MiB).
    weight_bytes = (w0.nbytes + (0 if wd is None else wd.nbytes)
                    + b.nbytes + affine.nbytes)
    act_bytes = (2 * tile_b * din * 4          # x tiles (double-buffered)
                 + 2 * tile_b * num_hidden * 4  # out tiles (double-buffered)
                 + 4 * tile_b * dh_pad * 4)     # live f32 activations in compute
    vmem_limit = int(min(max(1.25 * (2 * weight_bytes + act_bytes), 32 * 2**20),
                         64 * 2**20))

    out = pl.pallas_call(
        kernel,
        out_shape=jax.ShapeDtypeStruct((B, num_hidden), out_dtype),
        grid=(grid_b,),
        in_specs=in_specs,
        out_specs=pl.BlockSpec((tile_b, num_hidden), lambda i: (i, 0)),
        compiler_params=pltpu.CompilerParams(
            dimension_semantics=("parallel",),   # batch axis shardable across TCs
            vmem_limit_bytes=vmem_limit,
        ),
    )(*args)
    return out


# ----------------------------------------------------------------------------
# References
# ----------------------------------------------------------------------------
def reference_forward_f32(x, raw):
    """Plain-JAX, unfolded, f32 eval-mode forward (matches PyTorch eval semantics)."""
    z = x
    for p in raw:
        y = jnp.maximum(z @ p["w"].T + p["b"], 0.0)
        z = y * p["scale"] + p["shift"]
    return z


def reference_forward_folded(x, params):
    """Plain-JAX mirror of the exact folded/padded bf16 math the kernel performs."""
    z = jnp.dot(x.astype(DOT_DTYPE), params["w0"], preferred_element_type=jnp.float32)
    z = jnp.maximum(z + params["b"][0:1], 0.0)
    wd = params["wd"]
    for l in range(0 if wd is None else wd.shape[0]):
        z = jnp.dot(z.astype(DOT_DTYPE), wd[l], preferred_element_type=jnp.float32)
        z = jnp.maximum(z + params["b"][l + 1:l + 2], 0.0)
    y = z * params["affine"][0:1] + params["affine"][1:2]
    return y[:, : params["num_hidden"]]


if __name__ == "__main__":
    num_inputs, num_hidden, num_deep = 16, 32, 2
    batch = 8

    key = jax.random.PRNGKey(0)
    k_x, k_p = jax.random.split(key)
    x = jax.random.normal(k_x, (batch, num_inputs), jnp.float32)

    raw = init_params(k_p, num_inputs, num_hidden, num_deep)
    params = pack_params(raw, num_inputs, num_hidden)

    out = jax.block_until_ready(fcnn_encoder_forward(x, params))
    assert out.shape == (batch, num_hidden)

    # Tight check: same folded/padded bf16 math as the kernel.
    ref_exact = reference_forward_folded(x, params)
    assert jnp.allclose(out, ref_exact, atol=2e-3, rtol=2e-3), "mismatch vs folded bf16 reference"

    # Semantic check vs the unfolded f32 eval-mode forward (bf16-dot tolerance).
    ref_f32 = reference_forward_f32(x, raw)
    assert jnp.allclose(out, ref_f32, atol=8e-2, rtol=8e-2), "mismatch vs f32 eval reference"

    print("KERNEL_OK")
</pallas_src>

<mosaic_0001>
module attributes {stable_mosaic.version = 11 : i64} {
  func.func @kernel(%arg0: i32, %arg1: memref<8x16xf32, #tpu.memory_space<vmem>>, %arg2: memref<16x128xbf16, #tpu.memory_space<vmem>>, %arg3: memref<2x128x128xbf16, #tpu.memory_space<vmem>>, %arg4: memref<3x128xf32, #tpu.memory_space<vmem>>, %arg5: memref<2x128xf32, #tpu.memory_space<vmem>>, %arg6: memref<8x32xf32, #tpu.memory_space<vmem>>) attributes {dimension_semantics = [#tpu.dimension_semantics<parallel>], iteration_bounds = array<i64: 1>, scalar_prefetch = 0 : i64, scratch_operands = 0 : i64, tpu.core_type = #tpu.core_type<tc>, window_params = [{transform_indices = @transform_0, window_bounds = array<i64: 8, 16>}, {pipeline_mode = #tpu.pipeline_mode<synchronous>, transform_indices = @transform_1, window_bounds = array<i64: 16, 128>}, {pipeline_mode = #tpu.pipeline_mode<synchronous>, transform_indices = @transform_2, window_bounds = array<i64: 2, 128, 128>}, {pipeline_mode = #tpu.pipeline_mode<synchronous>, transform_indices = @transform_3, window_bounds = array<i64: 3, 128>}, {pipeline_mode = #tpu.pipeline_mode<synchronous>, transform_indices = @transform_4, window_bounds = array<i64: 2, 128>}, {transform_indices = @transform_5, window_bounds = array<i64: 8, 32>}]} {
    %c0 = arith.constant 0 : index
    %c0_0 = arith.constant 0 : index
    %0 = vector.load %arg1[%c0, %c0_0] : memref<8x16xf32, #tpu.memory_space<vmem>>, vector<8x16xf32>
    %1 = arith.truncf %0 : vector<8x16xf32> to vector<8x16xbf16>
    %c0_1 = arith.constant 0 : index
    %c0_2 = arith.constant 0 : index
    %2 = vector.load %arg2[%c0_1, %c0_2] : memref<16x128xbf16, #tpu.memory_space<vmem>>, vector<16x128xbf16>
    %cst = arith.constant dense<0.000000e+00> : vector<8x128xf32>
    %3 = tpu.matmul %1, %2, %cst {dimension_numbers = #tpu.dot_dimension_numbers<[1], [0], [0], [1], [0, 0, 1, 1], [], []>} : vector<8x16xbf16>, vector<16x128xbf16>, vector<8x128xf32> -> vector<8x128xf32>
    %c0_3 = arith.constant 0 : index
    %c0_4 = arith.constant 0 : index
    %4 = vector.load %arg4[%c0_3, %c0_4] : memref<3x128xf32, #tpu.memory_space<vmem>>, vector<1x128xf32>
    %5 = vector.broadcast %4 : vector<1x128xf32> to vector<8x128xf32>
    %6 = arith.addf %3, %5 : vector<8x128xf32>
    %cst_5 = arith.constant 0.000000e+00 : f32
    %7 = vector.broadcast %cst_5 : f32 to vector<8x128xf32>
    %8 = arith.maximumf %6, %7 : vector<8x128xf32>
    %9 = arith.truncf %8 : vector<8x128xf32> to vector<8x128xbf16>
    %c0_6 = arith.constant 0 : index
    %c0_7 = arith.constant 0 : index
    %c0_8 = arith.constant 0 : index
    %10 = vector.load %arg3[%c0_6, %c0_7, %c0_8] : memref<2x128x128xbf16, #tpu.memory_space<vmem>>, vector<1x128x128xbf16>
    %11 = vector.shape_cast %10 : vector<1x128x128xbf16> to vector<128x128xbf16>
    %cst_9 = arith.constant dense<0.000000e+00> : vector<8x128xf32>
    %12 = tpu.matmul %9, %11, %cst_9 {dimension_numbers = #tpu.dot_dimension_numbers<[1], [0], [0], [1], [0, 0, 1, 1], [], []>} : vector<8x128xbf16>, vector<128x128xbf16>, vector<8x128xf32> -> vector<8x128xf32>
    %c1 = arith.constant 1 : index
    %c0_10 = arith.constant 0 : index
    %13 = vector.load %arg4[%c1, %c0_10] : memref<3x128xf32, #tpu.memory_space<vmem>>, vector<1x128xf32>
    %14 = vector.broadcast %13 : vector<1x128xf32> to vector<8x128xf32>
    %15 = arith.addf %12, %14 : vector<8x128xf32>
    %cst_11 = arith.constant 0.000000e+00 : f32
    %16 = vector.broadcast %cst_11 : f32 to vector<8x128xf32>
    %17 = arith.maximumf %15, %16 : vector<8x128xf32>
    %18 = arith.truncf %17 : vector<8x128xf32> to vector<8x128xbf16>
    %c1_12 = arith.constant 1 : index
    %c0_13 = arith.constant 0 : index
    %c0_14 = arith.constant 0 : index
    %19 = vector.load %arg3[%c1_12, %c0_13, %c0_14] : memref<2x128x128xbf16, #tpu.memory_space<vmem>>, vector<1x128x128xbf16>
    %20 = vector.shape_cast %19 : vector<1x128x128xbf16> to vector<128x128xbf16>
    %cst_15 = arith.constant dense<0.000000e+00> : vector<8x128xf32>
    %21 = tpu.matmul %18, %20, %cst_15 {dimension_numbers = #tpu.dot_dimension_numbers<[1], [0], [0], [1], [0, 0, 1, 1], [], []>} : vector<8x128xbf16>, vector<128x128xbf16>, vector<8x128xf32> -> vector<8x128xf32>
    %c2 = arith.constant 2 : index
    %c0_16 = arith.constant 0 : index
    %22 = vector.load %arg4[%c2, %c0_16] : memref<3x128xf32, #tpu.memory_space<vmem>>, vector<1x128xf32>
    %23 = vector.broadcast %22 : vector<1x128xf32> to vector<8x128xf32>
    %24 = arith.addf %21, %23 : vector<8x128xf32>
    %cst_17 = arith.constant 0.000000e+00 : f32
    %25 = vector.broadcast %cst_17 : f32 to vector<8x128xf32>
    %26 = arith.maximumf %24, %25 : vector<8x128xf32>
    %c0_18 = arith.constant 0 : index
    %c0_19 = arith.constant 0 : index
    %27 = vector.load %arg5[%c0_18, %c0_19] : memref<2x128xf32, #tpu.memory_space<vmem>>, vector<1x128xf32>
    %28 = vector.broadcast %27 : vector<1x128xf32> to vector<8x128xf32>
    %29 = arith.mulf %26, %28 : vector<8x128xf32>
    %c1_20 = arith.constant 1 : index
    %c0_21 = arith.constant 0 : index
    %30 = vector.load %arg5[%c1_20, %c0_21] : memref<2x128xf32, #tpu.memory_space<vmem>>, vector<1x128xf32>
    %31 = vector.broadcast %30 : vector<1x128xf32> to vector<8x128xf32>
    %32 = arith.addf %29, %31 : vector<8x128xf32>
    %33 = vector.extract_strided_slice %32 {offsets = [0, 0], sizes = [8, 32], strides = [1, 1]} : vector<8x128xf32> to vector<8x32xf32>
    %c0_22 = arith.constant 0 : index
    %c0_23 = arith.constant 0 : index
    %34 = vector.load %arg6[%c0_22, %c0_23] : memref<8x32xf32, #tpu.memory_space<vmem>>, vector<8x32xf32>
    tpu.vector_store %arg6[%c0_22, %c0_23], %33 {strides = array<i32>} : memref<8x32xf32, #tpu.memory_space<vmem>>, vector<8x32xf32>,
    return
  }
  func.func @transform_0(%arg0: i32) -> (i32, i32) {
    %c0_i32 = arith.constant 0 : i32
    %c0_i32_0 = arith.constant 0 : i32
    return %arg0, %c0_i32 : i32, i32
  }
  func.func @transform_1(%arg0: i32) -> (i32, i32) {
    %c0_i32 = arith.constant 0 : i32
    %c0_i32_0 = arith.constant 0 : i32
    %c0_i32_1 = arith.constant 0 : i32
    return %c0_i32, %c0_i32_0 : i32, i32
  }
  func.func @transform_2(%arg0: i32) -> (i32, i32, i32) {
    %c0_i32 = arith.constant 0 : i32
    %c0_i32_0 = arith.constant 0 : i32
    %c0_i32_1 = arith.constant 0 : i32
    %c0_i32_2 = arith.constant 0 : i32
    return %c0_i32, %c0_i32_0, %c0_i32_1 : i32, i32, i32
  }
  func.func @transform_3(%arg0: i32) -> (i32, i32) {
    %c0_i32 = arith.constant 0 : i32
    %c0_i32_0 = arith.constant 0 : i32
    %c0_i32_1 = arith.constant 0 : i32
    return %c0_i32, %c0_i32_0 : i32, i32
  }
  func.func @transform_4(%arg0: i32) -> (i32, i32) {
    %c0_i32 = arith.constant 0 : i32
    %c0_i32_0 = arith.constant 0 : i32
    %c0_i32_1 = arith.constant 0 : i32
    return %c0_i32, %c0_i32_0 : i32, i32
  }
  func.func @transform_5(%arg0: i32) -> (i32, i32) {
    %c0_i32 = arith.constant 0 : i32
    %c0_i32_0 = arith.constant 0 : i32
    return %arg0, %c0_i32 : i32, i32
  }
}

</mosaic_0001>

<llo_original>
// kernel: tpu_custom_call.1
$region0: #{tpu_custom_call.1}
  #allocation0 [shape = 'u32[]', space=smem, size = 0x4, offset = 0x4, fixed_abs, tag = 'smem constant byte address 0x4 - core index']
  #allocation1 [shape = 'u32[144,128]{1,0:T(1,128)}', space=vmem, size = 0x12000, scoped, tag = 'internal scratch']
  %s0 = inlined_call_operand.hbm [shape: f32[8,16], index: 0, kind: input, shape index: {}]
  %s1 = inlined_call_operand.hbm [shape: bf16[16,128], index: 1, kind: input, shape index: {}]
  %s2 = inlined_call_operand.hbm [shape: bf16[2,128,128], index: 2, kind: input, shape index: {}]
  %s3 = inlined_call_operand.vmem [shape: f32[3,128], index: 3, kind: input, shape index: {}]
  %s4 = inlined_call_operand.vmem [shape: f32[2,128], index: 4, kind: input, shape index: {}]
  %s5 = inlined_call_operand.hbm [shape: f32[8,32], index: 5, kind: output, shape index: {}]
  %s6 = sld [smem:[#allocation0]]
  $region42: #{tpu_custom_call.1} parent=0
    _
  %s8 = ssub.s32 1, %s6
  %s9 = scalar_select 0, %s8, %s6
  $region1: #{tpu_custom_call.1} parent=0
    #allocation2 [shape = 'u8[4096]{0}', space=vmem, size = 0x1000, scoped, tag = 'input window, operand 0, single buffered']
    #allocation3 [shape = 's32[1]{0}', space=sflag, size = 0x4, scoped, tag = 'scoped memory for tpu_custom_call.1']
    #allocation4 [shape = 's32[1]{0}', space=sflag, size = 0x4, scoped, tag = 'scoped memory for tpu_custom_call.1']
    #allocation5 [shape = 'u8[4096]{0}', space=vmem, size = 0x1000, scoped, tag = 'input window, operand 1, single buffered']
    #allocation6 [shape = 's32[1]{0}', space=sflag, size = 0x4, scoped, tag = 'scoped memory for tpu_custom_call.1']
    #allocation7 [shape = 'u8[65536]{0}', space=vmem, size = 0x10000, scoped, tag = 'input window, operand 2, single buffered']
    #allocation8 [shape = 'u8[4096]{0}', space=vmem, size = 0x1000, scoped, tag = 'output window, operand 0, single buffered']
    %10 = vsyncpa [#allocation3], 0
    %11 = vsyncpa [#allocation6], 0
    %12 = vsyncpa [#allocation4], 0
    // Predicated region
    $region2: #{tpu_custom_call.1} parent=1 // pred_check
      _
    $region3: #{tpu_custom_call.1} parent=1 // pred_check_branch
      %14 = sbr.rel (0) target = $region5
    $region4: #{tpu_custom_call.1} parent=1 // pred_region
      %s16 = ssub.s32 128, 128
      %17 = vsyncadd [#allocation3], %s16
      %s19 = sshll.u32 [#allocation2], 4
      %s20 = int_to_ptr.vmem [resolvable:$true] %s19
      %22 = dma.hbm_to_vmem [thread:$0]  %s0, 128, %s20, [#allocation3]
    $region5: #{tpu_custom_call.1} parent=1 // pred_fallthru
      _
    // Predicated region
    $region6: #{tpu_custom_call.1} parent=1 // pred_check
      _
    $region7: #{tpu_custom_call.1} parent=1 // pred_check_branch
      %24 = sbr.rel (0) target = $region9
    $region8: #{tpu_custom_call.1} parent=1 // pred_region
      %s26 = ssub.s32 128, 128
      %27 = vsyncadd [#allocation6], %s26
      %s28 = sshll.u32 [#allocation5], 4
      %s29 = int_to_ptr.vmem [resolvable:$true] %s28
      %34 = dma.hbm_to_vmem [thread:$0]  %s1, 128, %s29, [#allocation6], 64, 64, 4
    $region9: #{tpu_custom_call.1} parent=1 // pred_fallthru
      _
    // Predicated region
    $region10: #{tpu_custom_call.1} parent=1 // pred_check
      _
    $region11: #{tpu_custom_call.1} parent=1 // pred_check_branch
      %36 = sbr.rel (0) target = $region13
    $region12: #{tpu_custom_call.1} parent=1 // pred_region
      %s38 = ssub.s32 2048, 2048
      %39 = vsyncadd [#allocation6], %s38
      %s40 = sshll.u32 [#allocation7], 4
      %s41 = int_to_ptr.vmem [resolvable:$true] %s40
      %46 = dma.hbm_to_vmem [thread:$0]  %s2, 2048, %s41, [#allocation6], 64, 64, 4
    $region13: #{tpu_custom_call.1} parent=1 // pred_fallthru
      _
    // Predicated region
    $region14: #{tpu_custom_call.1} parent=1 // pred_check
      _
    $region15: #{tpu_custom_call.1} parent=1 // pred_check_branch
      %48 = sbr.rel (0) target = $region17
    $region16: #{tpu_custom_call.1} parent=1 // pred_region
      _
    $region17: #{tpu_custom_call.1} parent=1 // pred_fallthru
      _
    // Predicated region
    $region18: #{tpu_custom_call.1} parent=1 // pred_check
      _
    $region19: #{tpu_custom_call.1} parent=1 // pred_check_branch
      %50 = sbr.rel (0) target = $region21
    $region20: #{tpu_custom_call.1} parent=1 // pred_region
      _
    $region21: #{tpu_custom_call.1} parent=1 // pred_fallthru
      _
    // Predicated region
    $region22: #{tpu_custom_call.1} parent=1 // pred_check
      _
    $region23: #{tpu_custom_call.1} parent=1 // pred_check_branch
      %52 = sbr.rel (0) target = $region25
    $region24: #{tpu_custom_call.1} parent=1 // pred_region
      %53 = dma.done [#allocation3], 128
    $region25: #{tpu_custom_call.1} parent=1 // pred_fallthru
      _
    // Predicated region
    $region26: #{tpu_custom_call.1} parent=1 // pred_check
      _
    $region27: #{tpu_custom_call.1} parent=1 // pred_check_branch
      %55 = sbr.rel (0) target = $region29
    $region28: #{tpu_custom_call.1} parent=1 // pred_region
      %56 = dma.done [#allocation6], 128
    $region29: #{tpu_custom_call.1} parent=1 // pred_fallthru
      _
    // Predicated region
    $region30: #{tpu_custom_call.1} parent=1 // pred_check
      _
    $region31: #{tpu_custom_call.1} parent=1 // pred_check_branch
      %58 = sbr.rel (0) target = $region33
    $region32: #{tpu_custom_call.1} parent=1 // pred_region
      %59 = dma.done [#allocation6], 2048
    $region33: #{tpu_custom_call.1} parent=1 // pred_fallthru
      _
    %v61 = vld [vmem:[#allocation2] sm:$0xff]
    %v62 = vpack.c.bf16 %v61, %v61
    %v63 = vld [vmem:[#allocation5] sm:$0xf]
    %v64 = vld [vmem:[#allocation5 + $0x4] sm:$0xf]
    %v65 = vld [vmem:[%s3] sm:$0x1]
    %v66 = vlaneseq
    %v67 = vshrl.u32 %v66, 7
    %v68 = vsub.s32 0, %v67
    %v69 = vrot.slane %v65, %v68
    %v72 = vunpack.c.l.b16 %v63
    %v73 = vunpack.c.l.b16 %v64
    %v74 = vpack.c.b16 %v73, %v72
    %vm76 = vcmask 130048
    %v78 = vsel %vm76, %v62, 0
    %80 = vmatprep.subr.bf16.mxu0 0
    %81 = vmatpush1.bf16.msra.mxu0 %v74
    %82 = vmatprep.subr.bf16.mxu0 0
    %83 = vmatpush1.bf16.msra.mxu0 0
    %84 = vmatprep.subr.bf16.mxu0 0
    %85 = vmatpush1.bf16.msra.mxu0 0
    %86 = vmatprep.subr.bf16.mxu0 0
    %87 = vmatpush1.bf16.msra.mxu0 0
    %88 = vmatprep.subr.bf16.mxu0 0
    %89 = vmatpush1.bf16.msra.mxu0 0
    %90 = vmatprep.subr.bf16.mxu0 0
    %91 = vmatpush1.bf16.msra.mxu0 0
    %92 = vmatprep.subr.bf16.mxu0 0
    %93 = vmatpush1.bf16.msra.mxu0 0
    %94 = vmatprep.subr.bf16.mxu0 0
    %95 = vmatpush1.bf16.msra.mxu0 0
    %96 = vmatprep.subr.bf16.mxu0 0
    %97 = vmatpush1.bf16.msra.mxu0 0
    %98 = vmatprep.subr.bf16.mxu0 0
    %99 = vmatpush1.bf16.msra.mxu0 0
    %100 = vmatprep.subr.bf16.mxu0 0
    %101 = vmatpush1.bf16.msra.mxu0 0
    %102 = vmatprep.subr.bf16.mxu0 0
    %103 = vmatpush1.bf16.msra.mxu0 0
    %104 = vmatprep.subr.bf16.mxu0 0
    %105 = vmatpush1.bf16.msra.mxu0 0
    %106 = vmatprep.subr.bf16.mxu0 0
    %107 = vmatpush1.bf16.msra.mxu0 0
    %108 = vmatprep.subr.bf16.mxu0 0
    %109 = vmatpush1.bf16.msra.mxu0 0
    %110 = vmatprep.subr.bf16.mxu0 0
    %111 = vmatpush1.bf16.msra.mxu0 0
    %112 = vmatprep.mubr.bf16.mxu0 0
    %113 = vmatmul.mubr.bf16.gmra.mrb[0].mxu0 %v78
    %v114 = vpop.f32.mrb[0].mxu0
    %v115 = vadd.f32 %v69, %v114
    %v116 = vpop.f32.mrb[0].mxu0
    %v117 = vpop.f32.mrb[0].mxu0
    %v118 = vpop.f32.mrb[0].mxu0
    %119 = vdwg.mxu0
    %v120 = vmax.f32 %v115, 0.0
    %v121 = vpack.c.bf16 %v120, %v120
    %v122 = vld [vmem:[#allocation7] sm:$0xf]
    %v123 = vld [vmem:[#allocation7 + $0x4] sm:$0xf]
    %v124 = vld [vmem:[#allocation7 + $0x8] sm:$0xf]
    %v125 = vld [vmem:[#allocation7 + $0xc] sm:$0xf]
    %v126 = vld [vmem:[#allocation7 + $0x10] sm:$0xf]
    %v127 = vld [vmem:[#allocation7 + $0x14] sm:$0xf]
    %v128 = vld [vmem:[#allocation7 + $0x18] sm:$0xf]
    %v129 = vld [vmem:[#allocation7 + $0x1c] sm:$0xf]
    %v130 = vld [vmem:[#allocation7 + $0x20] sm:$0xf]
    %v131 = vld [vmem:[#allocation7 + $0x24] sm:$0xf]
    %v132 = vld [vmem:[#allocation7 + $0x28] sm:$0xf]
    %v133 = vld [vmem:[#allocation7 + $0x2c] sm:$0xf]
    %v134 = vld [vmem:[#allocation7 + $0x30] sm:$0xf]
    %v135 = vld [vmem:[#allocation7 + $0x34] sm:$0xf]
    %v136 = vld [vmem:[#allocation7 + $0x38] sm:$0xf]
    %v137 = vld [vmem:[#allocation7 + $0x3c] sm:$0xf]
    %v138 = vld [vmem:[%s3 + $0x1] sm:$0x1]
    %v139 = vlaneseq
    %v140 = vshrl.u32 %v139, 7
    %v141 = vsub.s32 0, %v140
    %v142 = vrot.slane %v138, %v141
    %v159 = vunpack.c.l.b16 %v122
    %v160 = vunpack.c.l.b16 %v123
    %v161 = vunpack.c.l.b16 %v124
    %v162 = vunpack.c.l.b16 %v125
    %v163 = vunpack.c.l.b16 %v126
    %v164 = vunpack.c.l.b16 %v127
    %v165 = vunpack.c.l.b16 %v128
    %v166 = vunpack.c.l.b16 %v129
    %v167 = vunpack.c.l.b16 %v130
    %v168 = vunpack.c.l.b16 %v131
    %v169 = vunpack.c.l.b16 %v132
    %v170 = vunpack.c.l.b16 %v133
    %v171 = vunpack.c.l.b16 %v134
    %v172 = vunpack.c.l.b16 %v135
    %v173 = vunpack.c.l.b16 %v136
    %v174 = vunpack.c.l.b16 %v137
    %v175 = vpack.c.b16 %v160, %v159
    %v176 = vpack.c.b16 %v162, %v161
    %v177 = vpack.c.b16 %v164, %v163
    %v178 = vpack.c.b16 %v166, %v165
    %v179 = vpack.c.b16 %v168, %v167
    %v180 = vpack.c.b16 %v170, %v169
    %v181 = vpack.c.b16 %v172, %v171
    %v182 = vpack.c.b16 %v174, %v173
    %191 = vmatprep.subr.bf16.mxu0 0
    %192 = vmatpush1.bf16.msra.mxu0 %v175
    %193 = vmatprep.subr.bf16.mxu0 0
    %194 = vmatpush1.bf16.msra.mxu0 %v176
    %195 = vmatprep.subr.bf16.mxu0 0
    %196 = vmatpush1.bf16.msra.mxu0 %v177
    %197 = vmatprep.subr.bf16.mxu0 0
    %198 = vmatpush1.bf16.msra.mxu0 %v178
    %199 = vmatprep.subr.bf16.mxu0 0
    %200 = vmatpush1.bf16.msra.mxu0 %v179
    %201 = vmatprep.subr.bf16.mxu0 0
    %202 = vmatpush1.bf16.msra.mxu0 %v180
    %203 = vmatprep.subr.bf16.mxu0 0
    %204 = vmatpush1.bf16.msra.mxu0 %v181
    %205 = vmatprep.subr.bf16.mxu0 0
    %206 = vmatpush1.bf16.msra.mxu0 %v182
    %207 = vmatprep.subr.bf16.mxu0 0
    %208 = vmatpush1.bf16.msra.mxu0 0
    %209 = vmatprep.subr.bf16.mxu0 0
    %210 = vmatpush1.bf16.msra.mxu0 0
    %211 = vmatprep.subr.bf16.mxu0 0
    %212 = vmatpush1.bf16.msra.mxu0 0
    %213 = vmatprep.subr.bf16.mxu0 0
    %214 = vmatpush1.bf16.msra.mxu0 0
    %215 = vmatprep.subr.bf16.mxu0 0
    %216 = vmatpush1.bf16.msra.mxu0 0
    %217 = vmatprep.subr.bf16.mxu0 0
    %218 = vmatpush1.bf16.msra.mxu0 0
    %219 = vmatprep.subr.bf16.mxu0 0
    %220 = vmatpush1.bf16.msra.mxu0 0
    %221 = vmatprep.subr.bf16.mxu0 0
    %222 = vmatpush1.bf16.msra.mxu0 0
    %223 = vmatprep.mubr.bf16.mxu0 0
    %224 = vmatmul.mubr.bf16.gmra.mrb[0].mxu0 %v121
    %v225 = vpop.f32.mrb[0].mxu0
    %v226 = vadd.f32 %v142, %v225
    %v227 = vpop.f32.mrb[0].mxu0
    %v228 = vpop.f32.mrb[0].mxu0
    %v229 = vpop.f32.mrb[0].mxu0
    %230 = vdwg.mxu0
    %v231 = vmax.f32 %v226, 0.0
    %v232 = vpack.c.bf16 %v231, %v231
    %s233 = scalar_lea.vmem [#allocation7], 64
    %v234 = vld [vmem:[%s233] sm:$0xf]
    %v235 = vld [vmem:[%s233 + $0x4] sm:$0xf]
    %v236 = vld [vmem:[%s233 + $0x8] sm:$0xf]
    %v237 = vld [vmem:[%s233 + $0xc] sm:$0xf]
    %v238 = vld [vmem:[%s233 + $0x10] sm:$0xf]
    %v239 = vld [vmem:[%s233 + $0x14] sm:$0xf]
    %v240 = vld [vmem:[%s233 + $0x18] sm:$0xf]
    %v241 = vld [vmem:[%s233 + $0x1c] sm:$0xf]
    %v242 = vld [vmem:[%s233 + $0x20] sm:$0xf]
    %v243 = vld [vmem:[%s233 + $0x24] sm:$0xf]
    %v244 = vld [vmem:[%s233 + $0x28] sm:$0xf]
    %v245 = vld [vmem:[%s233 + $0x2c] sm:$0xf]
    %v246 = vld [vmem:[%s233 + $0x30] sm:$0xf]
    %v247 = vld [vmem:[%s233 + $0x34] sm:$0xf]
    %v248 = vld [vmem:[%s233 + $0x38] sm:$0xf]
    %v249 = vld [vmem:[%s233 + $0x3c] sm:$0xf]
    %v250 = vld [vmem:[%s3 + $0x2] sm:$0x1]
    %v251 = vlaneseq
    %v252 = vshrl.u32 %v251, 7
    %v253 = vsub.s32 0, %v252
    %v254 = vrot.slane %v250, %v253
    %v271 = vunpack.c.l.b16 %v234
    %v272 = vunpack.c.l.b16 %v235
    %v273 = vunpack.c.l.b16 %v236
    %v274 = vunpack.c.l.b16 %v237
    %v275 = vunpack.c.l.b16 %v238
    %v276 = vunpack.c.l.b16 %v239
    %v277 = vunpack.c.l.b16 %v240
    %v278 = vunpack.c.l.b16 %v241
    %v279 = vunpack.c.l.b16 %v242
    %v280 = vunpack.c.l.b16 %v243
    %v281 = vunpack.c.l.b16 %v244
    %v282 = vunpack.c.l.b16 %v245
    %v283 = vunpack.c.l.b16 %v246
    %v284 = vunpack.c.l.b16 %v247
    %v285 = vunpack.c.l.b16 %v248
    %v286 = vunpack.c.l.b16 %v249
    %v287 = vpack.c.b16 %v272, %v271
    %v288 = vpack.c.b16 %v274, %v273
    %v289 = vpack.c.b16 %v276, %v275
    %v290 = vpack.c.b16 %v278, %v277
    %v291 = vpack.c.b16 %v280, %v279
    %v292 = vpack.c.b16 %v282, %v281
    %v293 = vpack.c.b16 %v284, %v283
    %v294 = vpack.c.b16 %v286, %v285
    %303 = vmatprep.subr.bf16.mxu0 0
    %304 = vmatpush1.bf16.msra.mxu0 %v287
    %305 = vmatprep.subr.bf16.mxu0 0
    %306 = vmatpush1.bf16.msra.mxu0 %v288
    %307 = vmatprep.subr.bf16.mxu0 0
    %308 = vmatpush1.bf16.msra.mxu0 %v289
    %309 = vmatprep.subr.bf16.mxu0 0
    %310 = vmatpush1.bf16.msra.mxu0 %v290
    %311 = vmatprep.subr.bf16.mxu0 0
    %312 = vmatpush1.bf16.msra.mxu0 %v291
    %313 = vmatprep.subr.bf16.mxu0 0
    %314 = vmatpush1.bf16.msra.mxu0 %v292
    %315 = vmatprep.subr.bf16.mxu0 0
    %316 = vmatpush1.bf16.msra.mxu0 %v293
    %317 = vmatprep.subr.bf16.mxu0 0
    %318 = vmatpush1.bf16.msra.mxu0 %v294
    %319 = vmatprep.subr.bf16.mxu0 0
    %320 = vmatpush1.bf16.msra.mxu0 0
    %321 = vmatprep.subr.bf16.mxu0 0
    %322 = vmatpush1.bf16.msra.mxu0 0
    %323 = vmatprep.subr.bf16.mxu0 0
    %324 = vmatpush1.bf16.msra.mxu0 0
    %325 = vmatprep.subr.bf16.mxu0 0
    %326 = vmatpush1.bf16.msra.mxu0 0
    %327 = vmatprep.subr.bf16.mxu0 0
    %328 = vmatpush1.bf16.msra.mxu0 0
    %329 = vmatprep.subr.bf16.mxu0 0
    %330 = vmatpush1.bf16.msra.mxu0 0
    %331 = vmatprep.subr.bf16.mxu0 0
    %332 = vmatpush1.bf16.msra.mxu0 0
    %333 = vmatprep.subr.bf16.mxu0 0
    %334 = vmatpush1.bf16.msra.mxu0 0
    %335 = vmatprep.mubr.bf16.mxu0 0
    %336 = vmatmul.mubr.bf16.gmra.mrb[0].mxu0 %v232
    %v337 = vpop.f32.mrb[0].mxu0
    %v338 = vadd.f32 %v254, %v337
    %v339 = vpop.f32.mrb[0].mxu0
    %v340 = vpop.f32.mrb[0].mxu0
    %v341 = vpop.f32.mrb[0].mxu0
    %342 = vdwg.mxu0
    %v343 = vmax.f32 %v338, 0.0
    %v344 = vld [vmem:[%s4] sm:$0x1]
    %v345 = vlaneseq
    %v346 = vshrl.u32 %v345, 7
    %v347 = vsub.s32 0, %v346
    %v348 = vrot.slane %v344, %v347
    %v349 = vmul.f32 %v343, %v348
    %v350 = vld [vmem:[%s4 + $0x1] sm:$0x1]
    %v351 = vlaneseq
    %v352 = vshrl.u32 %v351, 7
    %v353 = vsub.s32 0, %v352
    %v354 = vrot.slane %v350, %v353
    %v355 = vadd.f32 %v349, %v354
    %vm356 = vcmask 261120
    %357 = vst.msk [vmem:[#allocation8] sm:$0xff] %vm356, %v355
    // Predicated region
    $region34: #{tpu_custom_call.1} parent=1 // pred_check
      _
    $region35: #{tpu_custom_call.1} parent=1 // pred_check_branch
      %359 = sbr.rel (0) target = $region37
    $region36: #{tpu_custom_call.1} parent=1 // pred_region
      %s361 = ssub.s32 128, 128
      %362 = vsyncadd [#allocation4], %s361
      %s364 = sshll.u32 [#allocation8], 4
      %s365 = int_to_ptr.vmem [resolvable:$true] %s364
      %367 = dma.vmem_to_hbm [thread:$0]  %s365, 128, %s5, [#allocation4]
    $region37: #{tpu_custom_call.1} parent=1 // pred_fallthru
      _
    // Predicated region
    $region38: #{tpu_custom_call.1} parent=1 // pred_check
      _
    $region39: #{tpu_custom_call.1} parent=1 // pred_check_branch
      %369 = sbr.rel (0) target = $region41
    $region40: #{tpu_custom_call.1} parent=1 // pred_region
      %370 = dma.done [#allocation4], 128
    $region41: #{tpu_custom_call.1} parent=1 // pred_fallthru
      _
    %371 = vsyncpa [#allocation3], 1
    %372 = vsyncpa [#allocation6], 1
    %373 = vsyncpa [#allocation4], 1

</llo_original>
